<compile_context>
chip_gen: v7x
topology: tpu7x:2x2x1
jax: 0.10.0
libtpu: 0.0.40
codegen_flags: <defaults>
</compile_context>

<pallas_src>
from functools import partial

import jax
import jax.numpy as jnp
from jax.experimental import pallas as pl
from jax.experimental.pallas import tpu as pltpu


_NEG = -1e30  # finite "-inf" pad value: exp() underflows to 0, never NaN


def _round_up(x, m):
    return (x + m - 1) // m * m


def _ce_kernel(x_ref, t_ref, nll_ref, mis_ref, *, n_valid):
    """One (C_pad, TILE_N) block of class-major logits.

    x_ref  : (C_pad, TILE_N) logits (classes on sublanes, samples on lanes)
    t_ref  : (1, TILE_N) int32 targets
    nll_ref: (1, TILE_N) f32 per-sample NLL (0 for padded samples)
    mis_ref: (1, TILE_N) int32 mispredict mask (0 for padded samples)
    """
    x = x_ref[...].astype(jnp.float32)                # cast once per tile
    t = t_ref[...]                                    # (1, T) int32
    c_pad, tile_n = x.shape

    cls = jax.lax.broadcasted_iota(jnp.int32, x.shape, 0)   # class id / sublane
    onehot = cls == t                                        # (C_pad, T)

    # Numerically stable cross-entropy: logsumexp(x) - x[target], per sample.
    m = jnp.max(x, axis=0, keepdims=True)                             # (1, T)
    lse = m + jnp.log(jnp.sum(jnp.exp(x - m), axis=0, keepdims=True))  # (1, T)
    tgt = jnp.sum(jnp.where(onehot, x, 0.0), axis=0, keepdims=True)    # (1, T)
    nll = lse - tgt                                                    # (1, T)

    # torch.argmax(inputs, dim=1): first class index attaining the row max.
    # Padded classes hold _NEG so they never attain the max.
    pred = jnp.min(jnp.where(x == m, cls, c_pad), axis=0, keepdims=True)
    mis = (pred != t).astype(jnp.int32)                                # (1, T)

    # Mask out padded samples (global sample index >= true N).
    col = pl.program_id(0) * tile_n + jax.lax.broadcasted_iota(
        jnp.int32, (1, tile_n), 1)
    valid = col < n_valid
    nll_ref[...] = jnp.where(valid, nll, 0.0)
    mis_ref[...] = jnp.where(valid, mis, 0)


@jax.jit
def ce_and_mispredict(logits, targets):
    """Returns (scalar mean CE loss over the true N, per-sample mispredict mask).

    logits: (N, C), targets: (N,) int.
    """
    n, c = logits.shape
    dt_bytes = jnp.dtype(logits.dtype).itemsize

    # Class axis padded only to the f32 sublane granule (8).
    c_pad = _round_up(max(c, 8), 8)

    # Sample tile: multiple of 128 lanes; keep the logits block <= ~2 MiB so
    # 2x double-buffering stays well inside the default scoped-VMEM limit on
    # every generation (v5e 16 MiB, v6e 32 MiB, v7x 32 of 64 MiB).
    # TODO(synk): for LLM-scale class counts (C >> 8k) the class axis should be
    # tiled too with an online/streaming logsumexp; not needed at these sizes.
    per_col_bytes = c_pad * 4
    tile_n = max(128, min((2 * 1024 * 1024 // per_col_bytes) // 128 * 128, 1024))
    tile_n = min(tile_n, _round_up(n, 128))
    n_pad = _round_up(n, tile_n)
    grid = n_pad // tile_n

    # Class-major layout for the kernel.
    # TODO(synk): in a real pipeline the producer (final projection) would emit
    # class-major directly; here the wrapper transposes + pads once per call.
    xt = jnp.pad(jnp.swapaxes(logits, 0, 1),
                 ((0, c_pad - c), (0, n_pad - n)),
                 constant_values=_NEG)                       # (C_pad, N_pad)
    tp = jnp.pad(targets.astype(jnp.int32).reshape(1, n),
                 ((0, 0), (0, n_pad - n)))                   # (1, N_pad)

    cost = pl.CostEstimate(
        flops=6 * c_pad * n_pad,
        transcendentals=c_pad * n_pad + n_pad,               # exp + log
        bytes_accessed=c_pad * n_pad * dt_bytes + n_pad * 4 + n_pad * 8,
    )

    nll, mis = pl.pallas_call(
        partial(_ce_kernel, n_valid=n),
        grid=(grid,),
        in_specs=[
            pl.BlockSpec((c_pad, tile_n), lambda i: (0, i)),
            pl.BlockSpec((1, tile_n), lambda i: (0, i)),
        ],
        out_specs=(
            pl.BlockSpec((1, tile_n), lambda i: (0, i)),
            pl.BlockSpec((1, tile_n), lambda i: (0, i)),
        ),
        out_shape=(
            jax.ShapeDtypeStruct((1, n_pad), jnp.float32),
            jax.ShapeDtypeStruct((1, n_pad), jnp.int32),
        ),
        compiler_params=pltpu.CompilerParams(
            dimension_semantics=("parallel",)),
        cost_estimate=cost,
    )(xt, tp)

    # nn.CrossEntropyLoss default reduction='mean' over the TRUE N
    # (padded samples were zeroed inside the kernel).
    loss = jnp.sum(nll) * (1.0 / n)
    return loss, mis[0, :n]


class DynamicFocalLoss:
    """JAX/Pallas port of the PyTorch DynamicFocalLoss module."""

    def __init__(self, delta=1, num_samples=64, num_batches=4):
        self.delta = delta
        self.num_batches = num_batches  # stands in for len(self.dataloader)
        # TODO(synk): the original keys weights_dict by dataset filenames pulled
        # from self.dataloader.dataset.samples; no dataset exists here, so we
        # synthesize deterministic filenames with the same indexing pattern.
        self.samples = [f"sample_{i:04d}.jpg" for i in range(num_samples)]
        self.weights_dict = {}

    def forward(self, inputs, targets, step):
        loss, mis = ce_and_mispredict(inputs, targets)

        if step > self.num_batches:  # mirrors: step > len(self.dataloader)
            # TODO(synk): the filename-keyed weights_dict is inherently
            # host-side Python state; this device->host fetch of the tiny
            # (N,) mask only happens on this branch.
            mis_host = jax.device_get(mis)
            batch_weight = 0
            for i in range(inputs.shape[0]):
                filename = self.samples[(step + i) % len(self.samples)]
                if filename not in self.weights_dict:
                    self.weights_dict[filename] = 1
                if int(mis_host[i]) != 0:
                    self.weights_dict[filename] += self.delta
                weight = self.weights_dict[filename]
                if weight > 1:
                    batch_weight += weight
            loss = loss * batch_weight

        step += inputs.shape[0]
        return loss, step


if __name__ == "__main__":
    key = jax.random.PRNGKey(0)
    k_logits, k_targets = jax.random.split(key)

    N, C = 8, 32  # batch=8, classes=32
    logits = jax.random.normal(k_logits, (N, C), dtype=jnp.float32)
    targets = jax.random.randint(k_targets, (N,), 0, C, dtype=jnp.int32)

    criterion = DynamicFocalLoss(delta=1, num_samples=64, num_batches=4)

    # --- Direct kernel check: CE loss and mispredict mask vs pure-JAX refs ---
    loss_k, mis_k = ce_and_mispredict(logits, targets)
    loss_k = jax.block_until_ready(loss_k)
    ref_loss = jnp.mean(
        jax.nn.logsumexp(logits, axis=-1)
        - jnp.take_along_axis(logits, targets[:, None], axis=-1)[:, 0])
    ref_mis = (jnp.argmax(logits, axis=1) != targets).astype(jnp.int32)
    assert jnp.allclose(loss_k, ref_loss, rtol=1e-5, atol=1e-5), (loss_k, ref_loss)
    assert jnp.array_equal(mis_k, ref_mis), (mis_k, ref_mis)

    # --- Path 1: plain cross-entropy (step <= len(dataloader)) ---
    loss1, step1 = criterion.forward(logits, targets, step=0)
    loss1 = jax.block_until_ready(loss1)
    assert jnp.allclose(loss1, ref_loss, rtol=1e-5, atol=1e-5), (loss1, ref_loss)

    # --- Path 2: weighted by the dynamic weights_dict (step > len(dataloader)) ---
    loss2, step2 = criterion.forward(logits, targets, step=step1 + 8)
    loss2 = jax.block_until_ready(loss2)

    assert jnp.isfinite(loss1) and jnp.isfinite(loss2)
    assert step1 == 8 and step2 == step1 + 8 + 8
    print("KERNEL_OK")
</pallas_src>

<mosaic_0001>
module attributes {stable_mosaic.version = 11 : i64} {
  func.func @_ce_kernel(%arg0: i32, %arg1: memref<32x128xf32, #tpu.memory_space<vmem>>, %arg2: memref<1x128xi32, #tpu.memory_space<vmem>>, %arg3: memref<1x128xf32, #tpu.memory_space<vmem>>, %arg4: memref<1x128xi32, #tpu.memory_space<vmem>>) attributes {dimension_semantics = [#tpu.dimension_semantics<parallel>], iteration_bounds = array<i64: 1>, scalar_prefetch = 0 : i64, scratch_operands = 0 : i64, tpu.core_type = #tpu.core_type<tc>, window_params = [{transform_indices = @transform_0, window_bounds = array<i64: 32, 128>}, {transform_indices = @transform_1, window_bounds = array<i64: 1, 128>}, {transform_indices = @transform_2, window_bounds = array<i64: 1, 128>}, {transform_indices = @transform_3, window_bounds = array<i64: 1, 128>}]} {
    %c0 = arith.constant 0 : index
    %c0_0 = arith.constant 0 : index
    %0 = vector.load %arg1[%c0, %c0_0] : memref<32x128xf32, #tpu.memory_space<vmem>>, vector<32x128xf32>
    %c0_1 = arith.constant 0 : index
    %c0_2 = arith.constant 0 : index
    %1 = vector.load %arg2[%c0_1, %c0_2] : memref<1x128xi32, #tpu.memory_space<vmem>>, vector<1x128xi32>
    %2 = tpu.iota {dimensions = array<i32: 0>} : vector<32x128xi32>
    %3 = vector.broadcast %1 : vector<1x128xi32> to vector<32x128xi32>
    %4 = arith.cmpi eq, %2, %3 : vector<32x128xi32>
    %cst = arith.constant dense<0xFF800000> : vector<128xf32>
    %5 = vector.multi_reduction <maximumf>, %0, %cst [0] : vector<32x128xf32> to vector<128xf32>
    %6 = vector.shape_cast %5 : vector<128xf32> to vector<1x128xf32>
    %7 = vector.broadcast %6 : vector<1x128xf32> to vector<32x128xf32>
    %8 = arith.subf %0, %7 : vector<32x128xf32>
    %9 = math.exp %8 : vector<32x128xf32>
    %cst_3 = arith.constant dense<0.000000e+00> : vector<128xf32>
    %10 = vector.multi_reduction <add>, %9, %cst_3 [0] : vector<32x128xf32> to vector<128xf32>
    %11 = vector.shape_cast %10 : vector<128xf32> to vector<1x128xf32>
    %12 = math.log %11 : vector<1x128xf32>
    %13 = arith.addf %6, %12 : vector<1x128xf32>
    %cst_4 = arith.constant 0.000000e+00 : f32
    %14 = vector.broadcast %cst_4 : f32 to vector<32x128xf32>
    %15 = arith.select %4, %0, %14 : vector<32x128xi1>, vector<32x128xf32>
    %cst_5 = arith.constant dense<0.000000e+00> : vector<128xf32>
    %16 = vector.multi_reduction <add>, %15, %cst_5 [0] : vector<32x128xf32> to vector<128xf32>
    %17 = vector.shape_cast %16 : vector<128xf32> to vector<1x128xf32>
    %18 = arith.subf %13, %17 : vector<1x128xf32>
    %19 = vector.broadcast %6 : vector<1x128xf32> to vector<32x128xf32>
    %20 = arith.cmpf oeq, %0, %19 : vector<32x128xf32>
    %c32_i32 = arith.constant 32 : i32
    %21 = vector.broadcast %c32_i32 : i32 to vector<32x128xi32>
    %22 = arith.select %20, %2, %21 : vector<32x128xi1>, vector<32x128xi32>
    %cst_6 = arith.constant dense<2147483647> : vector<128xi32>
    %23 = vector.multi_reduction <minsi>, %22, %cst_6 [0] : vector<32x128xi32> to vector<128xi32>
    %24 = vector.shape_cast %23 : vector<128xi32> to vector<1x128xi32>
    %25 = arith.cmpi ne, %24, %1 : vector<1x128xi32>
    %26 = arith.extui %25 : vector<1x128xi1> to vector<1x128xi32>
    %c128_i32 = arith.constant 128 : i32
    %27 = arith.muli %arg0, %c128_i32 : i32
    %28 = tpu.iota {dimensions = array<i32: 1>} : vector<1x128xi32>
    %29 = vector.broadcast %27 : i32 to vector<1x128xi32>
    %30 = arith.addi %29, %28 : vector<1x128xi32>
    %c8_i32 = arith.constant 8 : i32
    %31 = vector.broadcast %c8_i32 : i32 to vector<1x128xi32>
    %32 = arith.cmpi slt, %30, %31 : vector<1x128xi32>
    %cst_7 = arith.constant 0.000000e+00 : f32
    %33 = vector.broadcast %cst_7 : f32 to vector<1x128xf32>
    %34 = arith.select %32, %18, %33 : vector<1x128xi1>, vector<1x128xf32>
    %c0_8 = arith.constant 0 : index
    %c0_9 = arith.constant 0 : index
    %35 = vector.load %arg3[%c0_8, %c0_9] : memref<1x128xf32, #tpu.memory_space<vmem>>, vector<1x128xf32>
    tpu.vector_store %arg3[%c0_8, %c0_9], %34 {strides = array<i32>} : memref<1x128xf32, #tpu.memory_space<vmem>>, vector<1x128xf32>,
    %c0_i32 = arith.constant 0 : i32
    %36 = vector.broadcast %c0_i32 : i32 to vector<1x128xi32>
    %37 = arith.select %32, %26, %36 : vector<1x128xi1>, vector<1x128xi32>
    %c0_10 = arith.constant 0 : index
    %c0_11 = arith.constant 0 : index
    %38 = vector.load %arg4[%c0_10, %c0_11] : memref<1x128xi32, #tpu.memory_space<vmem>>, vector<1x128xi32>
    tpu.vector_store %arg4[%c0_10, %c0_11], %37 {strides = array<i32>} : memref<1x128xi32, #tpu.memory_space<vmem>>, vector<1x128xi32>,
    return
  }
  func.func @transform_0(%arg0: i32) -> (i32, i32) {
    %c0_i32 = arith.constant 0 : i32
    %c0_i32_0 = arith.constant 0 : i32
    return %c0_i32, %arg0 : i32, i32
  }
  func.func @transform_1(%arg0: i32) -> (i32, i32) {
    %c0_i32 = arith.constant 0 : i32
    %c0_i32_0 = arith.constant 0 : i32
    return %c0_i32, %arg0 : i32, i32
  }
  func.func @transform_2(%arg0: i32) -> (i32, i32) {
    %c0_i32 = arith.constant 0 : i32
    %c0_i32_0 = arith.constant 0 : i32
    return %c0_i32, %arg0 : i32, i32
  }
  func.func @transform_3(%arg0: i32) -> (i32, i32) {
    %c0_i32 = arith.constant 0 : i32
    %c0_i32_0 = arith.constant 0 : i32
    return %c0_i32, %arg0 : i32, i32
  }
}

</mosaic_0001>

<llo_original>
// kernel: ce_and_mispredict.1
$region0: #{ce_and_mispredict.1}
  #allocation0 [shape = 'u32[]', space=smem, size = 0x4, offset = 0x4, fixed_abs, tag = 'smem constant byte address 0x4 - core index']
  #allocation1 [shape = 'u32[144,128]{1,0:T(1,128)}', space=vmem, size = 0x12000, scoped, tag = 'internal scratch']
  %s0 = inlined_call_operand.vmem [shape: f32[32,128], index: 0, kind: input, shape index: {}]
  %s1 = inlined_call_operand.vmem [shape: s32[1,128], index: 1, kind: input, shape index: {}]
  %s2 = inlined_call_operand.vmem [shape: f32[1,128], index: 2, kind: output, shape index: {0}]
  %s3 = inlined_call_operand.vmem [shape: s32[1,128], index: 3, kind: output, shape index: {1}]
  %4 = xla_tuple %s2, %s3
  %s5 = sld [smem:[#allocation0]]
  $region26: #{ce_and_mispredict.1} parent=0
    _
  %s7 = ssub.s32 1, %s5
  %s8 = scalar_select 0, %s7, %s5
  // Predicated region
  $region2: #{ce_and_mispredict.1} parent=0 // pred_check
    _
  $region3: #{ce_and_mispredict.1} parent=0 // pred_check_branch
    %10 = sbr.rel (0) target = $region5
  $region4: #{ce_and_mispredict.1} parent=0 // pred_region
    _
  $region5: #{ce_and_mispredict.1} parent=0 // pred_fallthru
    _
  // Predicated region
  $region6: #{ce_and_mispredict.1} parent=0 // pred_check
    _
  $region7: #{ce_and_mispredict.1} parent=0 // pred_check_branch
    %12 = sbr.rel (0) target = $region9
  $region8: #{ce_and_mispredict.1} parent=0 // pred_region
    _
  $region9: #{ce_and_mispredict.1} parent=0 // pred_fallthru
    _
  %v13 = vld [vmem:[%s0] sm:$0xff]
  %v14 = vld [vmem:[%s0 + $0x8] sm:$0xff]
  %v15 = vld [vmem:[%s0 + $0x10] sm:$0xff]
  %v16 = vld [vmem:[%s0 + $0x18] sm:$0xff]
  %v17 = vld [vmem:[%s1] sm:$0x1]
  %v18 = vlaneseq
  %v19 = vshrl.u32 %v18, 7
  %v20 = vadd.s32 %v19, 8
  %v21 = vadd.s32 %v19, 16
  %v22 = vadd.s32 %v19, 24
  %v23 = vlaneseq
  %v24 = vshrl.u32 %v23, 7
  %v25 = vsub.s32 0, %v24
  %v26 = vrot.slane %v17, %v25
  %vm27 = vcmp.eq.s32.totalorder %v19, %v26
  %vm28 = vcmp.eq.s32.totalorder %v20, %v26
  %vm29 = vcmp.eq.s32.totalorder %v21, %v26
  %vm30 = vcmp.eq.s32.totalorder %v22, %v26
  %v31 = vmax.f32 %v13, %v14
  %v32 = vmax.f32 %v15, %v16
  %v33 = vmax.f32 %v31, %v32
  %v34 = vrot.slane %v33, 4
  %v35 = vmax.f32 %v33, %v34
  %v36 = vrot.slane %v35, 2
  %v37 = vmax.f32 %v35, %v36
  %v38 = vrot.slane %v37, 1
  %v39 = vmax.f32 %v37, %v38
  %v40 = vsub.f32 %v13, %v39
  %v41 = vsub.f32 %v14, %v39
  %v42 = vsub.f32 %v15, %v39
  %v43 = vsub.f32 %v16, %v39
  %v44 = vmul.f32 %v40, 1.442695
  %v45 = vpow.pop %v44
  %v46 = vmul.f32 %v41, 1.442695
  %v47 = vpow.pop %v46
  %v48 = vmul.f32 %v42, 1.442695
  %v49 = vpow.pop %v48
  %v50 = vmul.f32 %v43, 1.442695
  %v51 = vpow.pop %v50
  %v52 = vadd.f32 %v45, %v47
  %v53 = vadd.f32 %v52, %v49
  %v54 = vadd.f32 %v53, %v51
  %v55 = vrot.slane %v54, 4
  %v56 = vadd.f32 %v54, %v55
  %v57 = vrot.slane %v56, 2
  %v58 = vadd.f32 %v56, %v57
  %v59 = vrot.slane %v58, 1
  %v60 = vadd.f32 %v58, %v59
  %v61 = vlog2.pop %v60
  %v62 = vmul.f32 %v61, 0.6931472
  %v63 = vadd.f32 %v39, %v62
  %v64 = vsel %vm27, %v13, 0.0
  %v65 = vsel %vm28, %v14, 0.0
  %v66 = vsel %vm29, %v15, 0.0
  %v67 = vsel %vm30, %v16, 0.0
  %v68 = vadd.f32 %v64, %v65
  %v69 = vadd.f32 %v68, %v66
  %v70 = vadd.f32 %v69, %v67
  %v71 = vrot.slane %v70, 4
  %v72 = vadd.f32 %v70, %v71
  %v73 = vrot.slane %v72, 2
  %v74 = vadd.f32 %v72, %v73
  %v75 = vrot.slane %v74, 1
  %v76 = vadd.f32 %v74, %v75
  %v77 = vsub.f32 %v63, %v76
  %vm78 = vcmp.eq.f32.partialorder %v13, %v39
  %vm79 = vcmp.eq.f32.partialorder %v14, %v39
  %vm80 = vcmp.eq.f32.partialorder %v15, %v39
  %vm81 = vcmp.eq.f32.partialorder %v16, %v39
  %v82 = vsel %vm78, %v19, 32
  %v83 = vsel %vm79, %v20, 32
  %v84 = vsel %vm80, %v21, 32
  %v85 = vsel %vm81, %v22, 32
  %vm86 = vcmp.lt.s32.totalorder %v82, %v83
  %v87 = vsel %vm86, %v82, %v83
  %vm88 = vcmp.lt.s32.totalorder %v84, %v85
  %v89 = vsel %vm88, %v84, %v85
  %vm90 = vcmp.lt.s32.totalorder %v87, %v89
  %v91 = vsel %vm90, %v87, %v89
  %v92 = vrot.slane %v91, 4
  %vm93 = vcmp.lt.s32.totalorder %v91, %v92
  %v94 = vsel %vm93, %v91, %v92
  %v95 = vrot.slane %v94, 2
  %vm96 = vcmp.lt.s32.totalorder %v94, %v95
  %v97 = vsel %vm96, %v94, %v95
  %v98 = vrot.slane %v97, 1
  %vm99 = vcmp.lt.s32.totalorder %v97, %v98
  %v100 = vsel %vm99, %v97, %v98
  %vm101 = vcmp.ne.s32.totalorder %v100, %v17
  %v102 = vsel %vm101, 1, 0
  %s103 = smul.u32 0, 128
  %v104 = vlaneseq
  %v105 = vand.u32 %v104, 127
  %v106 = vstv %s103
  %v107 = vadd.s32 %v106, %v105
  %vm108 = vcmp.lt.s32.totalorder %v107, 8
  %v109 = vsel %vm108, %v77, 0.0
  %110 = vst [vmem:[%s2] sm:$0x1] %v109
  %v111 = vsel %vm108, %v102, 0
  %112 = vst [vmem:[%s3] sm:$0x1] %v111
  // Predicated region
  $region10: #{ce_and_mispredict.1} parent=0 // pred_check
    _
  $region11: #{ce_and_mispredict.1} parent=0 // pred_check_branch
    %114 = sbr.rel (0) target = $region13
  $region12: #{ce_and_mispredict.1} parent=0 // pred_region
    _
  $region13: #{ce_and_mispredict.1} parent=0 // pred_fallthru
    _
  // Predicated region
  $region14: #{ce_and_mispredict.1} parent=0 // pred_check
    _
  $region15: #{ce_and_mispredict.1} parent=0 // pred_check_branch
    %116 = sbr.rel (0) target = $region17
  $region16: #{ce_and_mispredict.1} parent=0 // pred_region
    _
  $region17: #{ce_and_mispredict.1} parent=0 // pred_fallthru
    _
  // Predicated region
  $region18: #{ce_and_mispredict.1} parent=0 // pred_check
    _
  $region19: #{ce_and_mispredict.1} parent=0 // pred_check_branch
    %118 = sbr.rel (0) target = $region21
  $region20: #{ce_and_mispredict.1} parent=0 // pred_region
    _
  $region21: #{ce_and_mispredict.1} parent=0 // pred_fallthru
    _
  // Predicated region
  $region22: #{ce_and_mispredict.1} parent=0 // pred_check
    _
  $region23: #{ce_and_mispredict.1} parent=0 // pred_check_branch
    %120 = sbr.rel (0) target = $region25
  $region24: #{ce_and_mispredict.1} parent=0 // pred_region
    _
  $region25: #{ce_and_mispredict.1} parent=0 // pred_fallthru
    _

</llo_original>
